<compile_context>
chip_gen: v7x
topology: tpu7x:2x2x1
jax: 0.10.0
libtpu: 0.0.40
codegen_flags: <defaults>
</compile_context>

<pallas_src>
import functools
import math

import jax
import jax.numpy as jnp
from jax.experimental import pallas as pl
from jax.experimental.pallas import tpu as pltpu

LANE = 128


def _round_up(x, m):
    return ((x + m - 1) // m) * m


def _pad2(a, shape):
    return jnp.pad(a, [(0, shape[0] - a.shape[0]), (0, shape[1] - a.shape[1])])


# ---------------------------------------------------------------------------
# Kernel 1: small prep (x @ W1 and the SE-net score).  Operands are O(N*F) and
# O(N*S) -- tiny next to the O(N^2) adjacency -- so they live whole in VMEM.
# ---------------------------------------------------------------------------
def prep_kernel(x_ref, w1_ref, wse1t_ref, bse1_ref, wse2t_ref, bse2_ref,
                support1_ref, score_ref):
    x = x_ref[...]                                                     # [N, F] f32

    # support1 = x @ W1  (bf16 MXU operands, f32 accumulation, stored bf16)
    s1 = jnp.dot(x.astype(jnp.bfloat16), w1_ref[...],
                 preferred_element_type=jnp.float32)                   # [N, Hp]
    support1_ref[...] = s1.astype(jnp.bfloat16)

    # SE-net on the per-node feature sum, kept in row form:
    #   layer 1 as a VPU broadcast-multiply + cross-sublane reduce (no width-1
    #   MXU pass), layer 2 as a lane-dense [1,S] @ [S,N] gemv.
    s_col = jnp.sum(x, axis=1, keepdims=True)                          # [N, 1]
    h_row = jnp.sum(wse1t_ref[...] * s_col, axis=0, keepdims=True) + bse1_ref[...]
    h_row = jnp.maximum(h_row, 0.0)                                    # [1, S]
    logit = jnp.dot(h_row, wse2t_ref[...],
                    preferred_element_type=jnp.float32) + bse2_ref[...]  # [1, N]
    score_ref[...] = jax.nn.sigmoid(logit)                             # [1, N]


# ---------------------------------------------------------------------------
# Kernel 2: first adjacency pass.  grid = (row_tiles, k_tiles).
#   acc += adj_tile @ support1_k ; at last k: relu + bias, SE scaling, and the
#   (row-local) xh @ [W11|W12] so pass 2 only needs support2.
# ---------------------------------------------------------------------------
def gc1_kernel(adj_ref, s1_ref, score_ref, b1_ref, wcat_ref, s2_ref, acc_ref):
    k = pl.program_id(1)

    @pl.when(k == 0)
    def _():
        acc_ref[...] = jnp.zeros_like(acc_ref)

    acc_ref[...] += jnp.dot(adj_ref[...], s1_ref[...],
                            preferred_element_type=jnp.float32)        # [tn, Hp]

    @pl.when(k == pl.num_programs(1) - 1)
    def _():
        hidden = jnp.maximum(acc_ref[...] + b1_ref[...], 0.0)           # relu(gc1)
        xh = hidden * score_ref[...]                                    # SE scaling
        s2_ref[...] = jnp.dot(xh.astype(jnp.bfloat16), wcat_ref[...],
                              preferred_element_type=jnp.float32
                              ).astype(jnp.bfloat16)                    # [tn, 2Cp]


# ---------------------------------------------------------------------------
# Kernel 3: second adjacency pass (fc11 + fc12 fused) + reparameterization +
# masked log_softmax over the real class lanes.
# ---------------------------------------------------------------------------
def gc2_kernel(adj_ref, s2_ref, bcat_ref, eps_ref, out_ref, acc_ref, *, c_real):
    k = pl.program_id(1)

    @pl.when(k == 0)
    def _():
        acc_ref[...] = jnp.zeros_like(acc_ref)

    acc_ref[...] += jnp.dot(adj_ref[...], s2_ref[...],
                            preferred_element_type=jnp.float32)        # [tn, 2Cp]

    @pl.when(k == pl.num_programs(1) - 1)
    def _():
        c_pad = out_ref.shape[-1]
        zcat = acc_ref[...] + bcat_ref[...]                             # [tn, 2Cp]
        mean = zcat[:, :c_pad]
        logstd = zcat[:, c_pad:]
        # reparameterization: exp kept in f32, unclamped (matches the reference)
        z = eps_ref[...] * jnp.exp(logstd) + mean                       # [tn, Cp]
        # mask padded class lanes before the row-wise log_softmax
        lane = jax.lax.broadcasted_iota(jnp.int32, z.shape, 1)
        z = jnp.where(lane < c_real, z, -1e30)
        z_max = jnp.max(z, axis=1, keepdims=True)
        zs = z - z_max
        lse = jnp.log(jnp.sum(jnp.exp(zs), axis=1, keepdims=True))
        out_ref[...] = zs - lse


# ---------------------------------------------------------------------------
# Wrapper: parameter padding/fusion, dtype casts, and the three pallas_calls.
# ---------------------------------------------------------------------------
def sv_gcn_forward(x, adj, params, eps, *, tile_n=128, tile_k=128):
    N, F = x.shape
    H = params["w1"].shape[1]
    C = params["w11"].shape[1]
    Hp = _round_up(H, LANE)
    Cp = _round_up(C, LANE)
    assert N % tile_n == 0 and N % tile_k == 0, "N must be a multiple of the tile sizes"

    f32, bf16 = jnp.float32, jnp.bfloat16

    # padded / fused parameters (lane dims padded to 128 -> dense MXU + stores)
    adj_b = adj.astype(bf16)
    w1p = _pad2(params["w1"], (F, Hp)).astype(bf16)
    b1p = _pad2(params["b1"], (1, Hp)).astype(f32)
    wcat = jnp.concatenate([_pad2(params["w11"], (H, Cp)),
                            _pad2(params["w12"], (H, Cp))], axis=1)
    wcat = _pad2(wcat, (Hp, 2 * Cp)).astype(bf16)
    bcat = jnp.concatenate([_pad2(params["b11"], (1, Cp)),
                            _pad2(params["b12"], (1, Cp))], axis=1).astype(f32)
    eps_p = _pad2(eps, (N, Cp)).astype(f32)
    wse1t = params["wse1"].T.astype(f32)        # [N, S]
    wse2t = params["wse2"].T.astype(f32)        # [S, N]

    vmem = pl.BlockSpec(memory_space=pltpu.MemorySpace.VMEM)
    cparams = pltpu.CompilerParams(
        dimension_semantics=("parallel", "arbitrary"),
        # Budgeted for v7x's 64 MiB physical VMEM (default scoped limit is only
        # 16/32 MiB on v5e / v6e-v7x); leaves headroom for double-buffered tiles.
        vmem_limit_bytes=48 * 1024 * 1024,
    )

    # --- prep: support1 = x @ W1 (bf16) and SE-net score row ------------------
    support1, score_row = pl.pallas_call(
        prep_kernel,
        out_shape=(jax.ShapeDtypeStruct((N, Hp), bf16),
                   jax.ShapeDtypeStruct((1, N), f32)),
        in_specs=[vmem] * 6,
        out_specs=(vmem, vmem),
    )(x, w1p, wse1t, params["bse1"], wse2t, params["bse2"])
    score_col = score_row.reshape(N, 1)

    grid = (N // tile_n, N // tile_k)

    # --- pass 1 over adj: hidden -> xh -> support2 = xh @ [W11|W12] ------------
    support2 = pl.pallas_call(
        gc1_kernel,
        out_shape=jax.ShapeDtypeStruct((N, 2 * Cp), bf16),
        grid_spec=pltpu.PrefetchScalarGridSpec(
            num_scalar_prefetch=0,
            grid=grid,
            in_specs=[
                pl.BlockSpec((tile_n, tile_k), lambda i, k: (i, k)),    # adj tile
                pl.BlockSpec((tile_k, Hp),     lambda i, k: (k, 0)),    # support1
                pl.BlockSpec((tile_n, 1),      lambda i, k: (i, 0)),    # SE score
                pl.BlockSpec((1, Hp),          lambda i, k: (0, 0)),    # b1
                pl.BlockSpec((Hp, 2 * Cp),     lambda i, k: (0, 0)),    # [W11|W12]
            ],
            out_specs=pl.BlockSpec((tile_n, 2 * Cp), lambda i, k: (i, 0)),
            scratch_shapes=[pltpu.VMEM((tile_n, Hp), f32)],
        ),
        compiler_params=cparams,
    )(adj_b, support1, score_col, b1p, wcat)

    # --- pass 2 over adj (fc11+fc12 fused): mean|logstd -> z -> log_softmax ----
    logp_pad = pl.pallas_call(
        functools.partial(gc2_kernel, c_real=C),
        out_shape=jax.ShapeDtypeStruct((N, Cp), f32),
        grid_spec=pltpu.PrefetchScalarGridSpec(
            num_scalar_prefetch=0,
            grid=grid,
            in_specs=[
                pl.BlockSpec((tile_n, tile_k), lambda i, k: (i, k)),    # adj tile
                pl.BlockSpec((tile_k, 2 * Cp), lambda i, k: (k, 0)),    # support2
                pl.BlockSpec((1, 2 * Cp),      lambda i, k: (0, 0)),    # [b11|b12]
                pl.BlockSpec((tile_n, Cp),     lambda i, k: (i, 0)),    # eps
            ],
            out_specs=pl.BlockSpec((tile_n, Cp), lambda i, k: (i, 0)),
            scratch_shapes=[pltpu.VMEM((tile_n, 2 * Cp), f32)],
        ),
        compiler_params=cparams,
    )(adj_b, support2, bcat, eps_p)

    return logp_pad[:, :C]


def init_params(key, nfeat, nhid, ncode, nclass, n_dim):
    # GraphConvolution init: U(-stdv, stdv), stdv = 1/sqrt(out_features)
    # Senet Linear init: U(-k, k), k = 1/sqrt(in_features)   (PyTorch default)
    senet_hid = int(n_dim // 3)
    keys = jax.random.split(key, 10)

    def u(k, shape, bound):
        return jax.random.uniform(k, shape, jnp.float32, -bound, bound)

    stdv1 = 1.0 / math.sqrt(nhid)
    stdv2 = 1.0 / math.sqrt(nclass)
    kse1 = 1.0 / math.sqrt(n_dim)
    kse2 = 1.0 / math.sqrt(senet_hid)

    return {
        "w1":  u(keys[0], (nfeat, nhid), stdv1),
        "b1":  u(keys[1], (1, nhid), stdv1),
        # SE-net Linear weights in PyTorch [out, in] convention; biases as rows.
        "wse1": u(keys[2], (senet_hid, n_dim), kse1),
        "bse1": u(keys[3], (1, senet_hid), kse1),
        "wse2": u(keys[4], (n_dim, senet_hid), kse2),
        "bse2": u(keys[5], (1, n_dim), kse2),
        "w11": u(keys[6], (nhid, nclass), stdv2),
        "b11": u(keys[7], (1, nclass), stdv2),
        "w12": u(keys[8], (nhid, nclass), stdv2),
        "b12": u(keys[9], (1, nclass), stdv2),
    }


if __name__ == "__main__":
    # Small shapes that still exercise the (128,128) adj tiling (2x2 grid):
    # N (= n_dim) nodes, nfeat input features, nhid hidden, nclass latent dims.
    N, nfeat, nhid, ncode, nclass = 256, 16, 32, 16, 8
    n_dim = N
    key = jax.random.PRNGKey(0)
    k_x, k_adj, k_eps, k_params = jax.random.split(key, 4)

    x = jax.random.normal(k_x, (N, nfeat), jnp.float32)

    # symmetric, row-normalized adjacency (deterministic)
    a = jax.random.uniform(k_adj, (N, N), jnp.float32)
    a = (a + a.T) * 0.5 + jnp.eye(N, dtype=jnp.float32)
    adj = a / jnp.sum(a, axis=1, keepdims=True)

    params = init_params(k_params, nfeat, nhid, ncode, nclass, n_dim)

    # Deterministic reparameterization noise (stands in for torch.randn).
    eps = jax.random.normal(k_eps, (N, nclass), jnp.float32)

    out = sv_gcn_forward(x, adj, params, eps)
    out = jax.block_until_ready(out)

    assert out.shape == (N, nclass)
    # log_softmax rows must sum to 1 in prob space
    assert jnp.allclose(jnp.sum(jnp.exp(out), axis=1), 1.0, atol=1e-4)
    print("KERNEL_OK")
</pallas_src>

<mosaic_0001>
module attributes {stable_mosaic.version = 11 : i64} {
  func.func @prep_kernel(%arg0: memref<256x16xf32, #tpu.memory_space<vmem>>, %arg1: memref<16x128xbf16, #tpu.memory_space<vmem>>, %arg2: memref<256x85xf32, #tpu.memory_space<vmem>>, %arg3: memref<1x85xf32, #tpu.memory_space<vmem>>, %arg4: memref<85x256xf32, #tpu.memory_space<vmem>>, %arg5: memref<1x256xf32, #tpu.memory_space<vmem>>, %arg6: memref<256x128xbf16, #tpu.memory_space<vmem>>, %arg7: memref<1x256xf32, #tpu.memory_space<vmem>>) attributes {dimension_semantics = [], scalar_prefetch = 0 : i64, scratch_operands = 0 : i64, tpu.core_type = #tpu.core_type<tc>} {
    %c0 = arith.constant 0 : index
    %c0_0 = arith.constant 0 : index
    %0 = vector.load %arg0[%c0, %c0_0] : memref<256x16xf32, #tpu.memory_space<vmem>>, vector<256x16xf32>
    %1 = arith.truncf %0 : vector<256x16xf32> to vector<256x16xbf16>
    %c0_1 = arith.constant 0 : index
    %c0_2 = arith.constant 0 : index
    %2 = vector.load %arg1[%c0_1, %c0_2] : memref<16x128xbf16, #tpu.memory_space<vmem>>, vector<16x128xbf16>
    %cst = arith.constant dense<0.000000e+00> : vector<256x128xf32>
    %3 = tpu.matmul %1, %2, %cst {dimension_numbers = #tpu.dot_dimension_numbers<[1], [0], [0], [1], [0, 0, 1, 1], [], []>} : vector<256x16xbf16>, vector<16x128xbf16>, vector<256x128xf32> -> vector<256x128xf32>
    %4 = arith.truncf %3 : vector<256x128xf32> to vector<256x128xbf16>
    %c0_3 = arith.constant 0 : index
    %c0_4 = arith.constant 0 : index
    %5 = vector.load %arg6[%c0_3, %c0_4] : memref<256x128xbf16, #tpu.memory_space<vmem>>, vector<256x128xbf16>
    tpu.vector_store %arg6[%c0_3, %c0_4], %4 {strides = array<i32>} : memref<256x128xbf16, #tpu.memory_space<vmem>>, vector<256x128xbf16>,
    %cst_5 = arith.constant dense<0.000000e+00> : vector<256xf32>
    %6 = vector.multi_reduction <add>, %0, %cst_5 [1] : vector<256x16xf32> to vector<256xf32>
    %7 = vector.shape_cast %6 : vector<256xf32> to vector<256x1xf32>
    %c0_6 = arith.constant 0 : index
    %c0_7 = arith.constant 0 : index
    %8 = vector.load %arg2[%c0_6, %c0_7] : memref<256x85xf32, #tpu.memory_space<vmem>>, vector<256x85xf32>
    %9 = vector.broadcast %7 : vector<256x1xf32> to vector<256x85xf32>
    %10 = arith.mulf %8, %9 : vector<256x85xf32>
    %cst_8 = arith.constant dense<0.000000e+00> : vector<85xf32>
    %11 = vector.multi_reduction <add>, %10, %cst_8 [0] : vector<256x85xf32> to vector<85xf32>
    %12 = vector.shape_cast %11 : vector<85xf32> to vector<1x85xf32>
    %c0_9 = arith.constant 0 : index
    %c0_10 = arith.constant 0 : index
    %13 = vector.load %arg3[%c0_9, %c0_10] : memref<1x85xf32, #tpu.memory_space<vmem>>, vector<1x85xf32>
    %14 = arith.addf %12, %13 : vector<1x85xf32>
    %cst_11 = arith.constant 0.000000e+00 : f32
    %15 = vector.broadcast %cst_11 : f32 to vector<1x85xf32>
    %16 = arith.maximumf %14, %15 : vector<1x85xf32>
    %c0_12 = arith.constant 0 : index
    %c0_13 = arith.constant 0 : index
    %17 = vector.load %arg4[%c0_12, %c0_13] : memref<85x256xf32, #tpu.memory_space<vmem>>, vector<85x256xf32>
    %cst_14 = arith.constant dense<0.000000e+00> : vector<1x256xf32>
    %18 = tpu.matmul %16, %17, %cst_14 {dimension_numbers = #tpu.dot_dimension_numbers<[1], [0], [0], [1], [0, 0, 1, 1], [], []>} : vector<1x85xf32>, vector<85x256xf32>, vector<1x256xf32> -> vector<1x256xf32>
    %c0_15 = arith.constant 0 : index
    %c0_16 = arith.constant 0 : index
    %19 = vector.load %arg5[%c0_15, %c0_16] : memref<1x256xf32, #tpu.memory_space<vmem>>, vector<1x256xf32>
    %20 = arith.addf %18, %19 : vector<1x256xf32>
    %21 = arith.negf %20 : vector<1x256xf32>
    %22 = math.exp %21 : vector<1x256xf32>
    %cst_17 = arith.constant 1.000000e+00 : f32
    %23 = vector.broadcast %cst_17 : f32 to vector<1x256xf32>
    %24 = arith.addf %23, %22 : vector<1x256xf32>
    %25 = arith.divf %23, %24 : vector<1x256xf32>
    %c0_18 = arith.constant 0 : index
    %c0_19 = arith.constant 0 : index
    %26 = vector.load %arg7[%c0_18, %c0_19] : memref<1x256xf32, #tpu.memory_space<vmem>>, vector<1x256xf32>
    tpu.vector_store %arg7[%c0_18, %c0_19], %25 {strides = array<i32>} : memref<1x256xf32, #tpu.memory_space<vmem>>, vector<1x256xf32>,
    return
  }
}

</mosaic_0001>

<llo_original>
// kernel: tpu_custom_call.1
$region0: #{tpu_custom_call.1}
  #allocation0 [shape = 'u32[]', space=smem, size = 0x4, offset = 0x4, fixed_abs, tag = 'smem constant byte address 0x4 - core index']
  #allocation1 [shape = 'u32[144,128]{1,0:T(1,128)}', space=vmem, size = 0x12000, scoped, tag = 'internal scratch']
  %s0 = inlined_call_operand.vmem [shape: f32[256,16], index: 0, kind: input, shape index: {}]
  %s1 = inlined_call_operand.vmem [shape: bf16[16,128], index: 1, kind: input, shape index: {}]
  %s2 = inlined_call_operand.vmem [shape: f32[256,85], index: 2, kind: input, shape index: {}]
  %s3 = inlined_call_operand.vmem [shape: f32[1,85], index: 3, kind: input, shape index: {}]
  %s4 = inlined_call_operand.vmem [shape: f32[85,256], index: 4, kind: input, shape index: {}]
  %s5 = inlined_call_operand.vmem [shape: f32[1,256], index: 5, kind: input, shape index: {}]
  %s6 = inlined_call_operand.hbm [shape: bf16[256,128], index: 6, kind: output, shape index: {0}]
  %s7 = inlined_call_operand.hbm [shape: f32[1,256], index: 7, kind: output, shape index: {1}]
  %8 = xla_tuple %s6, %s7
  %s9 = sld [smem:[#allocation0]]
  $region42: #{tpu_custom_call.1} parent=0
    _
  %s11 = ssub.s32 1, %s9
  %s12 = scalar_select 0, %s11, %s9
  $region1: #{tpu_custom_call.1} parent=0
    #allocation2 [shape = 'u8[65536]{0}', space=vmem, size = 0x10000, scoped, tag = 'output window, operand 0, single buffered']
    #allocation3 [shape = 's32[1]{0}', space=sflag, size = 0x4, scoped, tag = 'scoped memory for tpu_custom_call.1']
    #allocation4 [shape = 'u8[1024]{0}', space=vmem, size = 0x400, scoped, tag = 'output window, operand 1, single buffered']
    #allocation5 [shape = 's32[1]{0}', space=sflag, size = 0x4, scoped, tag = 'scoped memory for tpu_custom_call.1']
    %13 = vsyncpa [#allocation3], 0
    %14 = vsyncpa [#allocation5], 0
    // Predicated region
    $region2: #{tpu_custom_call.1} parent=1 // pred_check
      _
    $region3: #{tpu_custom_call.1} parent=1 // pred_check_branch
      %16 = sbr.rel (0) target = $region5
    $region4: #{tpu_custom_call.1} parent=1 // pred_region
      _
    $region5: #{tpu_custom_call.1} parent=1 // pred_fallthru
      _
    // Predicated region
    $region6: #{tpu_custom_call.1} parent=1 // pred_check
      _
    $region7: #{tpu_custom_call.1} parent=1 // pred_check_branch
      %18 = sbr.rel (0) target = $region9
    $region8: #{tpu_custom_call.1} parent=1 // pred_region
      _
    $region9: #{tpu_custom_call.1} parent=1 // pred_fallthru
      _
    // Predicated region
    $region10: #{tpu_custom_call.1} parent=1 // pred_check
      _
    $region11: #{tpu_custom_call.1} parent=1 // pred_check_branch
      %20 = sbr.rel (0) target = $region13
    $region12: #{tpu_custom_call.1} parent=1 // pred_region
      _
    $region13: #{tpu_custom_call.1} parent=1 // pred_fallthru
      _
    // Predicated region
    $region14: #{tpu_custom_call.1} parent=1 // pred_check
      _
    $region15: #{tpu_custom_call.1} parent=1 // pred_check_branch
      %22 = sbr.rel (0) target = $region17
    $region16: #{tpu_custom_call.1} parent=1 // pred_region
      _
    $region17: #{tpu_custom_call.1} parent=1 // pred_fallthru
      _
    // Predicated region
    $region18: #{tpu_custom_call.1} parent=1 // pred_check
      _
    $region19: #{tpu_custom_call.1} parent=1 // pred_check_branch
      %24 = sbr.rel (0) target = $region21
    $region20: #{tpu_custom_call.1} parent=1 // pred_region
      _
    $region21: #{tpu_custom_call.1} parent=1 // pred_fallthru
      _
    // Predicated region
    $region22: #{tpu_custom_call.1} parent=1 // pred_check
      _
    $region23: #{tpu_custom_call.1} parent=1 // pred_check_branch
      %26 = sbr.rel (0) target = $region25
    $region24: #{tpu_custom_call.1} parent=1 // pred_region
      _
    $region25: #{tpu_custom_call.1} parent=1 // pred_fallthru
      _
    %v28 = vld [vmem:[%s0] sm:$0xff]
    %v29 = vld [vmem:[%s0 + $0x8] sm:$0xff]
    %v30 = vld [vmem:[%s0 + $0x10] sm:$0xff]
    %v31 = vld [vmem:[%s0 + $0x18] sm:$0xff]
    %v32 = vld [vmem:[%s0 + $0x20] sm:$0xff]
    %v33 = vld [vmem:[%s0 + $0x28] sm:$0xff]
    %v34 = vld [vmem:[%s0 + $0x30] sm:$0xff]
    %v35 = vld [vmem:[%s0 + $0x38] sm:$0xff]
    %v36 = vld [vmem:[%s0 + $0x40] sm:$0xff]
    %v37 = vld [vmem:[%s0 + $0x48] sm:$0xff]
    %v38 = vld [vmem:[%s0 + $0x50] sm:$0xff]
    %v39 = vld [vmem:[%s0 + $0x58] sm:$0xff]
    %v40 = vld [vmem:[%s0 + $0x60] sm:$0xff]
    %v41 = vld [vmem:[%s0 + $0x68] sm:$0xff]
    %v42 = vld [vmem:[%s0 + $0x70] sm:$0xff]
    %v43 = vld [vmem:[%s0 + $0x78] sm:$0xff]
    %v44 = vld [vmem:[%s0 + $0x80] sm:$0xff]
    %v45 = vld [vmem:[%s0 + $0x88] sm:$0xff]
    %v46 = vld [vmem:[%s0 + $0x90] sm:$0xff]
    %v47 = vld [vmem:[%s0 + $0x98] sm:$0xff]
    %v48 = vld [vmem:[%s0 + $0xa0] sm:$0xff]
    %v49 = vld [vmem:[%s0 + $0xa8] sm:$0xff]
    %v50 = vld [vmem:[%s0 + $0xb0] sm:$0xff]
    %v51 = vld [vmem:[%s0 + $0xb8] sm:$0xff]
    %v52 = vld [vmem:[%s0 + $0xc0] sm:$0xff]
    %v53 = vld [vmem:[%s0 + $0xc8] sm:$0xff]
    %v54 = vld [vmem:[%s0 + $0xd0] sm:$0xff]
    %v55 = vld [vmem:[%s0 + $0xd8] sm:$0xff]
    %v56 = vld [vmem:[%s0 + $0xe0] sm:$0xff]
    %v57 = vld [vmem:[%s0 + $0xe8] sm:$0xff]
    %v58 = vld [vmem:[%s0 + $0xf0] sm:$0xff]
    %v59 = vld [vmem:[%s0 + $0xf8] sm:$0xff]
    %v60 = vpack.c.bf16 %v29, %v28
    %v61 = vpack.c.bf16 %v31, %v30
    %v62 = vpack.c.bf16 %v33, %v32
    %v63 = vpack.c.bf16 %v35, %v34
    %v64 = vpack.c.bf16 %v37, %v36
    %v65 = vpack.c.bf16 %v39, %v38
    %v66 = vpack.c.bf16 %v41, %v40
    %v67 = vpack.c.bf16 %v43, %v42
    %v68 = vpack.c.bf16 %v45, %v44
    %v69 = vpack.c.bf16 %v47, %v46
    %v70 = vpack.c.bf16 %v49, %v48
    %v71 = vpack.c.bf16 %v51, %v50
    %v72 = vpack.c.bf16 %v53, %v52
    %v73 = vpack.c.bf16 %v55, %v54
    %v74 = vpack.c.bf16 %v57, %v56
    %v75 = vpack.c.bf16 %v59, %v58
    %v76 = vld [vmem:[%s1] sm:$0xf]
    %v77 = vld [vmem:[%s1 + $0x4] sm:$0xf]
    %v80 = vunpack.c.l.b16 %v76
    %v81 = vunpack.c.l.b16 %v77
    %v82 = vpack.c.b16 %v81, %v80
    %vm84 = vcmask 130048
    %v86 = vsel %vm84, %v60, 0
    %v89 = vsel %vm84, %v61, 0
    %v92 = vsel %vm84, %v62, 0
    %v95 = vsel %vm84, %v63, 0
    %v98 = vsel %vm84, %v64, 0
    %v101 = vsel %vm84, %v65, 0
    %v104 = vsel %vm84, %v66, 0
    %v107 = vsel %vm84, %v67, 0
    %v110 = vsel %vm84, %v68, 0
    %v113 = vsel %vm84, %v69, 0
    %v116 = vsel %vm84, %v70, 0
    %v119 = vsel %vm84, %v71, 0
    %v122 = vsel %vm84, %v72, 0
    %v125 = vsel %vm84, %v73, 0
    %v128 = vsel %vm84, %v74, 0
    %v131 = vsel %vm84, %v75, 0
    %133 = vmatprep.subr.bf16.mxu0 0
    %134 = vmatpush1.bf16.msra.mxu0 %v82
    %135 = vmatprep.subr.bf16.mxu0 0
    %136 = vmatpush1.bf16.msra.mxu0 0
    %137 = vmatprep.subr.bf16.mxu0 0
    %138 = vmatpush1.bf16.msra.mxu0 0
    %139 = vmatprep.subr.bf16.mxu0 0
    %140 = vmatpush1.bf16.msra.mxu0 0
    %141 = vmatprep.subr.bf16.mxu0 0
    %142 = vmatpush1.bf16.msra.mxu0 0
    %143 = vmatprep.subr.bf16.mxu0 0
    %144 = vmatpush1.bf16.msra.mxu0 0
    %145 = vmatprep.subr.bf16.mxu0 0
    %146 = vmatpush1.bf16.msra.mxu0 0
    %147 = vmatprep.subr.bf16.mxu0 0
    %148 = vmatpush1.bf16.msra.mxu0 0
    %149 = vmatprep.subr.bf16.mxu0 0
    %150 = vmatpush1.bf16.msra.mxu0 0
    %151 = vmatprep.subr.bf16.mxu0 0
    %152 = vmatpush1.bf16.msra.mxu0 0
    %153 = vmatprep.subr.bf16.mxu0 0
    %154 = vmatpush1.bf16.msra.mxu0 0
    %155 = vmatprep.subr.bf16.mxu0 0
    %156 = vmatpush1.bf16.msra.mxu0 0
    %157 = vmatprep.subr.bf16.mxu0 0
    %158 = vmatpush1.bf16.msra.mxu0 0
    %159 = vmatprep.subr.bf16.mxu0 0
    %160 = vmatpush1.bf16.msra.mxu0 0
    %161 = vmatprep.subr.bf16.mxu0 0
    %162 = vmatpush1.bf16.msra.mxu0 0
    %163 = vmatprep.subr.bf16.mxu0 0
    %164 = vmatpush1.bf16.msra.mxu0 0
    %165 = vmatprep.mubr.bf16.mxu0 0
    %166 = vmatmul.mubr.bf16.gmra.mrb[0].mxu0 %v86
    %v167 = vpop.f32.mrb[0].mxu0
    %v168 = vadd.f32 0.0, %v167
    %v169 = vpop.f32.mrb[0].mxu0
    %v170 = vpop.f32.mrb[0].mxu0
    %v171 = vadd.f32 0.0, %v170
    %v172 = vpop.f32.mrb[0].mxu0
    %173 = vmatprep.mubr.bf16.mxu0 0
    %174 = vmatmul.mubr.bf16.gmra.mrb[0].mxu0 %v89
    %v175 = vpop.f32.mrb[0].mxu0
    %v176 = vadd.f32 0.0, %v175
    %v177 = vpop.f32.mrb[0].mxu0
    %v178 = vpop.f32.mrb[0].mxu0
    %v179 = vadd.f32 0.0, %v178
    %v180 = vpop.f32.mrb[0].mxu0
    %181 = vmatprep.mubr.bf16.mxu0 0
    %182 = vmatmul.mubr.bf16.gmra.mrb[0].mxu0 %v92
    %v183 = vpop.f32.mrb[0].mxu0
    %v184 = vadd.f32 0.0, %v183
    %v185 = vpop.f32.mrb[0].mxu0
    %v186 = vpop.f32.mrb[0].mxu0
    %v187 = vadd.f32 0.0, %v186
    %v188 = vpop.f32.mrb[0].mxu0
    %189 = vmatprep.mubr.bf16.mxu0 0
    %190 = vmatmul.mubr.bf16.gmra.mrb[0].mxu0 %v95
    %v191 = vpop.f32.mrb[0].mxu0
    %v192 = vadd.f32 0.0, %v191
    %v193 = vpop.f32.mrb[0].mxu0
    %v194 = vpop.f32.mrb[0].mxu0
    %v195 = vadd.f32 0.0, %v194
    %v196 = vpop.f32.mrb[0].mxu0
    %197 = vmatprep.mubr.bf16.mxu0 0
    %198 = vmatmul.mubr.bf16.gmra.mrb[0].mxu0 %v98
    %v199 = vpop.f32.mrb[0].mxu0
    %v200 = vadd.f32 0.0, %v199
    %v201 = vpop.f32.mrb[0].mxu0
    %v202 = vpop.f32.mrb[0].mxu0
    %v203 = vadd.f32 0.0, %v202
    %v204 = vpop.f32.mrb[0].mxu0
    %205 = vmatprep.mubr.bf16.mxu0 0
    %206 = vmatmul.mubr.bf16.gmra.mrb[0].mxu0 %v101
    %v207 = vpop.f32.mrb[0].mxu0
    %v208 = vadd.f32 0.0, %v207
    %v209 = vpop.f32.mrb[0].mxu0
    %v210 = vpop.f32.mrb[0].mxu0
    %v211 = vadd.f32 0.0, %v210
    %v212 = vpop.f32.mrb[0].mxu0
    %213 = vmatprep.mubr.bf16.mxu0 0
    %214 = vmatmul.mubr.bf16.gmra.mrb[0].mxu0 %v104
    %v215 = vpop.f32.mrb[0].mxu0
    %v216 = vadd.f32 0.0, %v215
    %v217 = vpop.f32.mrb[0].mxu0
    %v218 = vpop.f32.mrb[0].mxu0
    %v219 = vadd.f32 0.0, %v218
    %v220 = vpop.f32.mrb[0].mxu0
    %221 = vmatprep.mubr.bf16.mxu0 0
    %222 = vmatmul.mubr.bf16.gmra.mrb[0].mxu0 %v107
    %v223 = vpop.f32.mrb[0].mxu0
    %v224 = vadd.f32 0.0, %v223
    %v225 = vpop.f32.mrb[0].mxu0
    %v226 = vpop.f32.mrb[0].mxu0
    %v227 = vadd.f32 0.0, %v226
    %v228 = vpop.f32.mrb[0].mxu0
    %229 = vmatprep.mubr.bf16.mxu0 0
    %230 = vmatmul.mubr.bf16.gmra.mrb[0].mxu0 %v110
    %v231 = vpop.f32.mrb[0].mxu0
    %v232 = vadd.f32 0.0, %v231
    %v233 = vpop.f32.mrb[0].mxu0
    %v234 = vpop.f32.mrb[0].mxu0
    %v235 = vadd.f32 0.0, %v234
    %v236 = vpop.f32.mrb[0].mxu0
    %237 = vmatprep.mubr.bf16.mxu0 0
    %238 = vmatmul.mubr.bf16.gmra.mrb[0].mxu0 %v113
    %v239 = vpop.f32.mrb[0].mxu0
    %v240 = vadd.f32 0.0, %v239
    %v241 = vpop.f32.mrb[0].mxu0
    %v242 = vpop.f32.mrb[0].mxu0
    %v243 = vadd.f32 0.0, %v242
    %v244 = vpop.f32.mrb[0].mxu0
    %245 = vmatprep.mubr.bf16.mxu0 0
    %246 = vmatmul.mubr.bf16.gmra.mrb[0].mxu0 %v116
    %v247 = vpop.f32.mrb[0].mxu0
    %v248 = vadd.f32 0.0, %v247
    %v249 = vpop.f32.mrb[0].mxu0
    %v250 = vpop.f32.mrb[0].mxu0
    %v251 = vadd.f32 0.0, %v250
    %v252 = vpop.f32.mrb[0].mxu0
    %253 = vmatprep.mubr.bf16.mxu0 0
    %254 = vmatmul.mubr.bf16.gmra.mrb[0].mxu0 %v119
    %v255 = vpop.f32.mrb[0].mxu0
    %v256 = vadd.f32 0.0, %v255
    %v257 = vpop.f32.mrb[0].mxu0
    %v258 = vpop.f32.mrb[0].mxu0
    %v259 = vadd.f32 0.0, %v258
    %v260 = vpop.f32.mrb[0].mxu0
    %261 = vmatprep.mubr.bf16.mxu0 0
    %262 = vmatmul.mubr.bf16.gmra.mrb[0].mxu0 %v122
    %v263 = vpop.f32.mrb[0].mxu0
    %v264 = vadd.f32 0.0, %v263
    %v265 = vpop.f32.mrb[0].mxu0
    %v266 = vpop.f32.mrb[0].mxu0
    %v267 = vadd.f32 0.0, %v266
    %v268 = vpop.f32.mrb[0].mxu0
    %269 = vmatprep.mubr.bf16.mxu0 0
    %270 = vmatmul.mubr.bf16.gmra.mrb[0].mxu0 %v125
    %v271 = vpop.f32.mrb[0].mxu0
    %v272 = vadd.f32 0.0, %v271
    %v273 = vpop.f32.mrb[0].mxu0
    %v274 = vpop.f32.mrb[0].mxu0
    %v275 = vadd.f32 0.0, %v274
    %v276 = vpop.f32.mrb[0].mxu0
    %277 = vmatprep.mubr.bf16.mxu0 0
    %278 = vmatmul.mubr.bf16.gmra.mrb[0].mxu0 %v128
    %v279 = vpop.f32.mrb[0].mxu0
    %v280 = vadd.f32 0.0, %v279
    %v281 = vpop.f32.mrb[0].mxu0
    %v282 = vpop.f32.mrb[0].mxu0
    %v283 = vadd.f32 0.0, %v282
    %v284 = vpop.f32.mrb[0].mxu0
    %285 = vmatprep.mubr.bf16.mxu0 0
    %286 = vmatmul.mubr.bf16.gmra.mrb[0].mxu0 %v131
    %v287 = vpop.f32.mrb[0].mxu0
    %v288 = vadd.f32 0.0, %v287
    %v289 = vpop.f32.mrb[0].mxu0
    %v290 = vpop.f32.mrb[0].mxu0
    %v291 = vadd.f32 0.0, %v290
    %v292 = vpop.f32.mrb[0].mxu0
    %293 = vdwg.mxu0
    %v294 = vpack.c.bf16 %v171, %v168
    %v295 = vpack.c.bf16 %v179, %v176
    %v296 = vpack.c.bf16 %v187, %v184
    %v297 = vpack.c.bf16 %v195, %v192
    %v298 = vpack.c.bf16 %v203, %v200
    %v299 = vpack.c.bf16 %v211, %v208
    %v300 = vpack.c.bf16 %v219, %v216
    %v301 = vpack.c.bf16 %v227, %v224
    %v302 = vpack.c.bf16 %v235, %v232
    %v303 = vpack.c.bf16 %v243, %v240
    %v304 = vpack.c.bf16 %v251, %v248
    %v305 = vpack.c.bf16 %v259, %v256
    %v306 = vpack.c.bf16 %v267, %v264
    %v307 = vpack.c.bf16 %v275, %v272
    %v308 = vpack.c.bf16 %v283, %v280
    %v309 = vpack.c.bf16 %v291, %v288
    %v326 = vunpack.c.l.b16 %v294
    %v327 = vunpack.c.h.b16 %v294
    %v328 = vunpack.c.l.b16 %v295
    %v329 = vunpack.c.h.b16 %v295
    %v330 = vunpack.c.l.b16 %v296
    %v331 = vunpack.c.h.b16 %v296
    %v332 = vunpack.c.l.b16 %v297
    %v333 = vunpack.c.h.b16 %v297
    %v334 = vunpack.c.l.b16 %v298
    %v335 = vunpack.c.h.b16 %v298
    %v336 = vunpack.c.l.b16 %v299
    %v337 = vunpack.c.h.b16 %v299
    %v338 = vunpack.c.l.b16 %v300
    %v339 = vunpack.c.h.b16 %v300
    %v340 = vunpack.c.l.b16 %v301
    %v341 = vunpack.c.h.b16 %v301
    %v342 = vunpack.c.l.b16 %v302
    %v343 = vunpack.c.h.b16 %v302
    %v344 = vunpack.c.l.b16 %v303
    %v345 = vunpack.c.h.b16 %v303
    %v346 = vunpack.c.l.b16 %v304
    %v347 = vunpack.c.h.b16 %v304
    %v348 = vunpack.c.l.b16 %v305
    %v349 = vunpack.c.h.b16 %v305
    %v350 = vunpack.c.l.b16 %v306
    %v351 = vunpack.c.h.b16 %v306
    %v352 = vunpack.c.l.b16 %v307
    %v353 = vunpack.c.h.b16 %v307
    %v354 = vunpack.c.l.b16 %v308
    %v355 = vunpack.c.h.b16 %v308
    %v356 = vunpack.c.l.b16 %v309
    %v357 = vunpack.c.h.b16 %v309
    %v358 = vpack.c.b16 %v326, %v326
    %v359 = vpack.c.b16 %v327, %v327
    %v360 = vpack.c.b16 %v328, %v328
    %v361 = vpack.c.b16 %v329, %v329
    %v362 = vpack.c.b16 %v330, %v330
    %v363 = vpack.c.b16 %v331, %v331
    %v364 = vpack.c.b16 %v332, %v332
    %v365 = vpack.c.b16 %v333, %v333
    %v366 = vpack.c.b16 %v334, %v334
    %v367 = vpack.c.b16 %v335, %v335
    %v368 = vpack.c.b16 %v336, %v336
    %v369 = vpack.c.b16 %v337, %v337
    %v370 = vpack.c.b16 %v338, %v338
    %v371 = vpack.c.b16 %v339, %v339
    %v372 = vpack.c.b16 %v340, %v340
    %v373 = vpack.c.b16 %v341, %v341
    %v374 = vpack.c.b16 %v342, %v342
    %v375 = vpack.c.b16 %v343, %v343
    %v376 = vpack.c.b16 %v344, %v344
    %v377 = vpack.c.b16 %v345, %v345
    %v378 = vpack.c.b16 %v346, %v346
    %v379 = vpack.c.b16 %v347, %v347
    %v380 = vpack.c.b16 %v348, %v348
    %v381 = vpack.c.b16 %v349, %v349
    %v382 = vpack.c.b16 %v350, %v350
    %v383 = vpack.c.b16 %v351, %v351
    %v384 = vpack.c.b16 %v352, %v352
    %v385 = vpack.c.b16 %v353, %v353
    %v386 = vpack.c.b16 %v354, %v354
    %v387 = vpack.c.b16 %v355, %v355
    %v388 = vpack.c.b16 %v356, %v356
    %v389 = vpack.c.b16 %v357, %v357
    %422 = vst [vmem:[#allocation2] sm:$0xf] %v358
    %423 = vst [vmem:[#allocation2 + $0x4] sm:$0xf] %v359
    %424 = vst [vmem:[#allocation2 + $0x8] sm:$0xf] %v360
    %425 = vst [vmem:[#allocation2 + $0xc] sm:$0xf] %v361
    %426 = vst [vmem:[#allocation2 + $0x10] sm:$0xf] %v362
    %427 = vst [vmem:[#allocation2 + $0x14] sm:$0xf] %v363
    %428 = vst [vmem:[#allocation2 + $0x18] sm:$0xf] %v364
    %429 = vst [vmem:[#allocation2 + $0x1c] sm:$0xf] %v365
    %430 = vst [vmem:[#allocation2 + $0x20] sm:$0xf] %v366
    %431 = vst [vmem:[#allocation2 + $0x24] sm:$0xf] %v367
    %432 = vst [vmem:[#allocation2 + $0x28] sm:$0xf] %v368
    %433 = vst [vmem:[#allocation2 + $0x2c] sm:$0xf] %v369
    %434 = vst [vmem:[#allocation2 + $0x30] sm:$0xf] %v370
    %435 = vst [vmem:[#allocation2 + $0x34] sm:$0xf] %v371
    %436 = vst [vmem:[#allocation2 + $0x38] sm:$0xf] %v372
    %437 = vst [vmem:[#allocation2 + $0x3c] sm:$0xf] %v373
    %438 = vst [vmem:[#allocation2 + $0x40] sm:$0xf] %v374
    %439 = vst [vmem:[#allocation2 + $0x44] sm:$0xf] %v375
    %440 = vst [vmem:[#allocation2 + $0x48] sm:$0xf] %v376
    %441 = vst [vmem:[#allocation2 + $0x4c] sm:$0xf] %v377
    %442 = vst [vmem:[#allocation2 + $0x50] sm:$0xf] %v378
    %443 = vst [vmem:[#allocation2 + $0x54] sm:$0xf] %v379
    %444 = vst [vmem:[#allocation2 + $0x58] sm:$0xf] %v380
    %445 = vst [vmem:[#allocation2 + $0x5c] sm:$0xf] %v381
    %446 = vst [vmem:[#allocation2 + $0x60] sm:$0xf] %v382
    %447 = vst [vmem:[#allocation2 + $0x64] sm:$0xf] %v383
    %448 = vst [vmem:[#allocation2 + $0x68] sm:$0xf] %v384
    %449 = vst [vmem:[#allocation2 + $0x6c] sm:$0xf] %v385
    %450 = vst [vmem:[#allocation2 + $0x70] sm:$0xf] %v386
    %451 = vst [vmem:[#allocation2 + $0x74] sm:$0xf] %v387
    %452 = vst [vmem:[#allocation2 + $0x78] sm:$0xf] %v388
    %453 = vst [vmem:[#allocation2 + $0x7c] sm:$0xf] %v389
    %v454 = vsel %vm84, %v28, 0.0
    %455 = vadd.xlane.f32.xlu0 %v454
    %v456 = vpop.xlane.xlu0 %455
    %v457 = vsel %vm84, %v29, 0.0
    %458 = vadd.xlane.f32.xlu0 %v457
    %v459 = vpop.xlane.xlu0 %458
    %v460 = vsel %vm84, %v30, 0.0
    %461 = vadd.xlane.f32.xlu0 %v460
    %v462 = vpop.xlane.xlu0 %461
    %v463 = vsel %vm84, %v31, 0.0
    %464 = vadd.xlane.f32.xlu0 %v463
    %v465 = vpop.xlane.xlu0 %464
    %v466 = vsel %vm84, %v32, 0.0
    %467 = vadd.xlane.f32.xlu0 %v466
    %v468 = vpop.xlane.xlu0 %467
    %v469 = vsel %vm84, %v33, 0.0
    %470 = vadd.xlane.f32.xlu0 %v469
    %v471 = vpop.xlane.xlu0 %470
    %v472 = vsel %vm84, %v34, 0.0
    %473 = vadd.xlane.f32.xlu0 %v472
    %v474 = vpop.xlane.xlu0 %473
    %v475 = vsel %vm84, %v35, 0.0
    %476 = vadd.xlane.f32.xlu0 %v475
    %v477 = vpop.xlane.xlu0 %476
    %v478 = vsel %vm84, %v36, 0.0
    %479 = vadd.xlane.f32.xlu0 %v478
    %v480 = vpop.xlane.xlu0 %479
    %v481 = vsel %vm84, %v37, 0.0
    %482 = vadd.xlane.f32.xlu0 %v481
    %v483 = vpop.xlane.xlu0 %482
    %v484 = vsel %vm84, %v38, 0.0
    %485 = vadd.xlane.f32.xlu0 %v484
    %v486 = vpop.xlane.xlu0 %485
    %v487 = vsel %vm84, %v39, 0.0
    %488 = vadd.xlane.f32.xlu0 %v487
    %v489 = vpop.xlane.xlu0 %488
    %v490 = vsel %vm84, %v40, 0.0
    %491 = vadd.xlane.f32.xlu0 %v490
    %v492 = vpop.xlane.xlu0 %491
    %v493 = vsel %vm84, %v41, 0.0
    %494 = vadd.xlane.f32.xlu0 %v493
    %v495 = vpop.xlane.xlu0 %494
    %v496 = vsel %vm84, %v42, 0.0
    %497 = vadd.xlane.f32.xlu0 %v496
    %v498 = vpop.xlane.xlu0 %497
    %v499 = vsel %vm84, %v43, 0.0
    %500 = vadd.xlane.f32.xlu0 %v499
    %v501 = vpop.xlane.xlu0 %500
    %v502 = vsel %vm84, %v44, 0.0
    %503 = vadd.xlane.f32.xlu0 %v502
    %v504 = vpop.xlane.xlu0 %503
    %v505 = vsel %vm84, %v45, 0.0
    %506 = vadd.xlane.f32.xlu0 %v505
    %v507 = vpop.xlane.xlu0 %506
    %v508 = vsel %vm84, %v46, 0.0
    %509 = vadd.xlane.f32.xlu0 %v508
    %v510 = vpop.xlane.xlu0 %509
    %v511 = vsel %vm84, %v47, 0.0
    %512 = vadd.xlane.f32.xlu0 %v511
    %v513 = vpop.xlane.xlu0 %512
    %v514 = vsel %vm84, %v48, 0.0
    %515 = vadd.xlane.f32.xlu0 %v514
    %v516 = vpop.xlane.xlu0 %515
    %v517 = vsel %vm84, %v49, 0.0
    %518 = vadd.xlane.f32.xlu0 %v517
    %v519 = vpop.xlane.xlu0 %518
    %v520 = vsel %vm84, %v50, 0.0
    %521 = vadd.xlane.f32.xlu0 %v520
    %v522 = vpop.xlane.xlu0 %521
    %v523 = vsel %vm84, %v51, 0.0
    %524 = vadd.xlane.f32.xlu0 %v523
    %v525 = vpop.xlane.xlu0 %524
    %v526 = vsel %vm84, %v52, 0.0
    %527 = vadd.xlane.f32.xlu0 %v526
    %v528 = vpop.xlane.xlu0 %527
    %v529 = vsel %vm84, %v53, 0.0
    %530 = vadd.xlane.f32.xlu0 %v529
    %v531 = vpop.xlane.xlu0 %530
    %v532 = vsel %vm84, %v54, 0.0
    %533 = vadd.xlane.f32.xlu0 %v532
    %v534 = vpop.xlane.xlu0 %533
    %v535 = vsel %vm84, %v55, 0.0
    %536 = vadd.xlane.f32.xlu0 %v535
    %v537 = vpop.xlane.xlu0 %536
    %v538 = vsel %vm84, %v56, 0.0
    %539 = vadd.xlane.f32.xlu0 %v538
    %v540 = vpop.xlane.xlu0 %539
    %v541 = vsel %vm84, %v57, 0.0
    %542 = vadd.xlane.f32.xlu0 %v541
    %v543 = vpop.xlane.xlu0 %542
    %v544 = vsel %vm84, %v58, 0.0
    %545 = vadd.xlane.f32.xlu0 %v544
    %v546 = vpop.xlane.xlu0 %545
    %v547 = vsel %vm84, %v59, 0.0
    %548 = vadd.xlane.f32.xlu0 %v547
    %v549 = vpop.xlane.xlu0 %548
    %v550 = vld [vmem:[%s2] sm:$0xff]
    %v551 = vld [vmem:[%s2 + $0x8] sm:$0xff]
    %v552 = vld [vmem:[%s2 + $0x10] sm:$0xff]
    %v553 = vld [vmem:[%s2 + $0x18] sm:$0xff]
    %v554 = vld [vmem:[%s2 + $0x20] sm:$0xff]
    %v555 = vld [vmem:[%s2 + $0x28] sm:$0xff]
    %v556 = vld [vmem:[%s2 + $0x30] sm:$0xff]
    %v557 = vld [vmem:[%s2 + $0x38] sm:$0xff]
    %v558 = vld [vmem:[%s2 + $0x40] sm:$0xff]
    %v559 = vld [vmem:[%s2 + $0x48] sm:$0xff]
    %v560 = vld [vmem:[%s2 + $0x50] sm:$0xff]
    %v561 = vld [vmem:[%s2 + $0x58] sm:$0xff]
    %v562 = vld [vmem:[%s2 + $0x60] sm:$0xff]
    %v563 = vld [vmem:[%s2 + $0x68] sm:$0xff]
    %v564 = vld [vmem:[%s2 + $0x70] sm:$0xff]
    %v565 = vld [vmem:[%s2 + $0x78] sm:$0xff]
    %v566 = vld [vmem:[%s2 + $0x80] sm:$0xff]
    %v567 = vld [vmem:[%s2 + $0x88] sm:$0xff]
    %v568 = vld [vmem:[%s2 + $0x90] sm:$0xff]
    %v569 = vld [vmem:[%s2 + $0x98] sm:$0xff]
    %v570 = vld [vmem:[%s2 + $0xa0] sm:$0xff]
    %v571 = vld [vmem:[%s2 + $0xa8] sm:$0xff]
    %v572 = vld [vmem:[%s2 + $0xb0] sm:$0xff]
    %v573 = vld [vmem:[%s2 + $0xb8] sm:$0xff]
    %v574 = vld [vmem:[%s2 + $0xc0] sm:$0xff]
    %v575 = vld [vmem:[%s2 + $0xc8] sm:$0xff]
    %v576 = vld [vmem:[%s2 + $0xd0] sm:$0xff]
    %v577 = vld [vmem:[%s2 + $0xd8] sm:$0xff]
    %v578 = vld [vmem:[%s2 + $0xe0] sm:$0xff]
    %v579 = vld [vmem:[%s2 + $0xe8] sm:$0xff]
    %v580 = vld [vmem:[%s2 + $0xf0] sm:$0xff]
    %v581 = vld [vmem:[%s2 + $0xf8] sm:$0xff]
    %v582 = vmul.f32 %v550, %v456
    %v583 = vmul.f32 %v551, %v459
    %v584 = vmul.f32 %v552, %v462
    %v585 = vmul.f32 %v553, %v465
    %v586 = vmul.f32 %v554, %v468
    %v587 = vmul.f32 %v555, %v471
    %v588 = vmul.f32 %v556, %v474
    %v589 = vmul.f32 %v557, %v477
    %v590 = vmul.f32 %v558, %v480
    %v591 = vmul.f32 %v559, %v483
    %v592 = vmul.f32 %v560, %v486
    %v593 = vmul.f32 %v561, %v489
    %v594 = vmul.f32 %v562, %v492
    %v595 = vmul.f32 %v563, %v495
    %v596 = vmul.f32 %v564, %v498
    %v597 = vmul.f32 %v565, %v501
    %v598 = vmul.f32 %v566, %v504
    %v599 = vmul.f32 %v567, %v507
    %v600 = vmul.f32 %v568, %v510
    %v601 = vmul.f32 %v569, %v513
    %v602 = vmul.f32 %v570, %v516
    %v603 = vmul.f32 %v571, %v519
    %v604 = vmul.f32 %v572, %v522
    %v605 = vmul.f32 %v573, %v525
    %v606 = vmul.f32 %v574, %v528
    %v607 = vmul.f32 %v575, %v531
    %v608 = vmul.f32 %v576, %v534
    %v609 = vmul.f32 %v577, %v537
    %v610 = vmul.f32 %v578, %v540
    %v611 = vmul.f32 %v579, %v543
    %v612 = vmul.f32 %v580, %v546
    %v613 = vmul.f32 %v581, %v549
    %vm614 = vcmask 695296
    %v615 = vsel %vm614, %v582, 0.0
    %v616 = vsel %vm614, %v583, 0.0
    %v617 = vadd.f32 %v615, %v616
    %v618 = vsel %vm614, %v584, 0.0
    %v619 = vadd.f32 %v617, %v618
    %v620 = vsel %vm614, %v585, 0.0
    %v621 = vadd.f32 %v619, %v620
    %v622 = vsel %vm614, %v586, 0.0
    %v623 = vadd.f32 %v621, %v622
    %v624 = vsel %vm614, %v587, 0.0
    %v625 = vadd.f32 %v623, %v624
    %v626 = vsel %vm614, %v588, 0.0
    %v627 = vadd.f32 %v625, %v626
    %v628 = vsel %vm614, %v589, 0.0
    %v629 = vadd.f32 %v627, %v628
    %v630 = vsel %vm614, %v590, 0.0
    %v631 = vadd.f32 %v629, %v630
    %v632 = vsel %vm614, %v591, 0.0
    %v633 = vadd.f32 %v631, %v632
    %v634 = vsel %vm614, %v592, 0.0
    %v635 = vadd.f32 %v633, %v634
    %v636 = vsel %vm614, %v593, 0.0
    %v637 = vadd.f32 %v635, %v636
    %v638 = vsel %vm614, %v594, 0.0
    %v639 = vadd.f32 %v637, %v638
    %v640 = vsel %vm614, %v595, 0.0
    %v641 = vadd.f32 %v639, %v640
    %v642 = vsel %vm614, %v596, 0.0
    %v643 = vadd.f32 %v641, %v642
    %v644 = vsel %vm614, %v597, 0.0
    %v645 = vadd.f32 %v643, %v644
    %v646 = vsel %vm614, %v598, 0.0
    %v647 = vadd.f32 %v645, %v646
    %v648 = vsel %vm614, %v599, 0.0
    %v649 = vadd.f32 %v647, %v648
    %v650 = vsel %vm614, %v600, 0.0
    %v651 = vadd.f32 %v649, %v650
    %v652 = vsel %vm614, %v601, 0.0
    %v653 = vadd.f32 %v651, %v652
    %v654 = vsel %vm614, %v602, 0.0
    %v655 = vadd.f32 %v653, %v654
    %v656 = vsel %vm614, %v603, 0.0
    %v657 = vadd.f32 %v655, %v656
    %v658 = vsel %vm614, %v604, 0.0
    %v659 = vadd.f32 %v657, %v658
    %v660 = vsel %vm614, %v605, 0.0
    %v661 = vadd.f32 %v659, %v660
    %v662 = vsel %vm614, %v606, 0.0
    %v663 = vadd.f32 %v661, %v662
    %v664 = vsel %vm614, %v607, 0.0
    %v665 = vadd.f32 %v663, %v664
    %v666 = vsel %vm614, %v608, 0.0
    %v667 = vadd.f32 %v665, %v666
    %v668 = vsel %vm614, %v609, 0.0
    %v669 = vadd.f32 %v667, %v668
    %v670 = vsel %vm614, %v610, 0.0
    %v671 = vadd.f32 %v669, %v670
    %v672 = vsel %vm614, %v611, 0.0
    %v673 = vadd.f32 %v671, %v672
    %v674 = vsel %vm614, %v612, 0.0
    %v675 = vadd.f32 %v673, %v674
    %v676 = vsel %vm614, %v613, 0.0
    %v677 = vadd.f32 %v675, %v676
    %v678 = vrot.slane %v677, 4
    %v679 = vadd.f32 %v677, %v678
    %v680 = vrot.slane %v679, 2
    %v681 = vadd.f32 %v679, %v680
    %v682 = vrot.slane %v681, 1
    %v683 = vadd.f32 %v681, %v682
    %v684 = vld [vmem:[%s3] sm:$0x1]
    %v685 = vadd.f32 %v683, %v684
    %v686 = vmax.f32 %v685, 0.0
    %v687 = vld [vmem:[%s4] sm:$0xff]
    %v688 = vld [vmem:[%s4 + $0x8] sm:$0xff]
    %v689 = vld [vmem:[%s4 + $0x10] sm:$0xff]
    %v690 = vld [vmem:[%s4 + $0x18] sm:$0xff]
    %v691 = vld [vmem:[%s4 + $0x20] sm:$0xff]
    %v692 = vld [vmem:[%s4 + $0x28] sm:$0xff]
    %v693 = vld [vmem:[%s4 + $0x30] sm:$0xff]
    %v694 = vld [vmem:[%s4 + $0x38] sm:$0xff]
    %v695 = vld [vmem:[%s4 + $0x40] sm:$0xff]
    %v696 = vld [vmem:[%s4 + $0x48] sm:$0xff]
    %v697 = vld [vmem:[%s4 + $0x50] sm:$0xff]
    %v698 = vld [vmem:[%s4 + $0x58] sm:$0xff]
    %v699 = vld [vmem:[%s4 + $0x60] sm:$0xff]
    %v700 = vld [vmem:[%s4 + $0x68] sm:$0xff]
    %v701 = vld [vmem:[%s4 + $0x70] sm:$0xff]
    %v702 = vld [vmem:[%s4 + $0x78] sm:$0xff]
    %v703 = vld [vmem:[%s4 + $0x80] sm:$0xff]
    %v704 = vld [vmem:[%s4 + $0x88] sm:$0xff]
    %v705 = vld [vmem:[%s4 + $0x90] sm:$0xff]
    %v706 = vld [vmem:[%s4 + $0x98] sm:$0xff]
    %v707 = vld [vmem:[%s4 + $0xa0] sm:$0x1f]
    %v708 = vld [vmem:[%s4 + $0xa8] sm:$0x1f]
    %v709 = vld [vmem:[%s5] sm:$0x3]
    %v711 = vlaneseq
    %v712 = vshrl.u32 %v711, 7
    %v713 = vsub.s32 0, %v712
    %v714 = vrot.slane %v709, %v713
    %v715 = vlaneseq
    %v716 = vshrl.u32 %v715, 7
    %v717 = vsub.s32 1, %v716
    %v718 = vrot.slane %v709, %v717
    %v722 = vsel %vm614, %v686, 0
    %vm724 = vcmask 1044480
    %v726 = vsel %vm724, %v707, 0
    %v729 = vsel %vm724, %v708, 0
    %731 = vmatprep.subr.mxu0 %v688
    %732 = vmatpush1.msra.mxu0 %v687
    %733 = vmatprep.subr.mxu0 %v690
    %734 = vmatpush1.msra.mxu0 %v689
    %735 = vmatprep.subr.mxu0 %v692
    %736 = vmatpush1.msra.mxu0 %v691
    %737 = vmatprep.subr.mxu0 %v694
    %738 = vmatpush1.msra.mxu0 %v693
    %739 = vmatprep.subr.mxu0 %v696
    %740 = vmatpush1.msra.mxu0 %v695
    %741 = vmatprep.subr.mxu0 %v698
    %742 = vmatpush1.msra.mxu0 %v697
    %743 = vmatprep.subr.mxu0 %v700
    %744 = vmatpush1.msra.mxu0 %v699
    %745 = vmatprep.subr.mxu0 %v702
    %746 = vmatpush1.msra.mxu0 %v701
    %747 = vmatprep.subr.mxu0 %v704
    %748 = vmatpush1.msra.mxu0 %v703
    %749 = vmatprep.subr.mxu0 %v706
    %750 = vmatpush1.msra.mxu0 %v705
    %751 = vmatprep.subr.mxu0 %v729
    %752 = vmatpush1.msra.mxu0 %v726
    %753 = vmatprep.subr.mxu0 0.0
    %754 = vmatpush1.msra.mxu0 0.0
    %755 = vmatprep.subr.mxu0 0.0
    %756 = vmatpush1.msra.mxu0 0.0
    %757 = vmatprep.subr.mxu0 0.0
    %758 = vmatpush1.msra.mxu0 0.0
    %759 = vmatprep.subr.mxu0 0.0
    %760 = vmatpush1.msra.mxu0 0.0
    %761 = vmatprep.subr.mxu0 0.0
    %762 = vmatpush1.msra.mxu0 0.0
    %763 = vmatprep.subr.mxu0 0.0
    %764 = vmatpush1.msra.mxu0 0.0
    %765 = vmatprep.subr.mxu0 0.0
    %766 = vmatpush1.msra.mxu0 0.0
    %767 = vmatprep.subr.mxu0 0.0
    %768 = vmatpush1.msra.mxu0 0.0
    %769 = vmatprep.subr.mxu0 0.0
    %770 = vmatpush1.msra.mxu0 0.0
    %771 = vmatprep.subr.mxu0 0.0
    %772 = vmatpush1.msra.mxu0 0.0
    %773 = vmatprep.subr.mxu0 0.0
    %774 = vmatpush1.msra.mxu0 0.0
    %775 = vmatprep.subr.mxu0 0.0
    %776 = vmatpush1.msra.mxu0 0.0
    %777 = vmatprep.subr.mxu0 0.0
    %778 = vmatpush1.msra.mxu0 0.0
    %779 = vmatprep.subr.mxu0 0.0
    %780 = vmatpush1.msra.mxu0 0.0
    %781 = vmatprep.subr.mxu0 0.0
    %782 = vmatpush1.msra.mxu0 0.0
    %783 = vmatprep.subr.mxu0 0.0
    %784 = vmatpush1.msra.mxu0 0.0
    %785 = vmatprep.subr.mxu0 0.0
    %786 = vmatpush1.msra.mxu0 0.0
    %787 = vmatprep.subr.mxu0 0.0
    %788 = vmatpush1.msra.mxu0 0.0
    %789 = vmatprep.subr.mxu0 0.0
    %790 = vmatpush1.msra.mxu0 0.0
    %791 = vmatprep.subr.mxu0 0.0
    %792 = vmatpush1.msra.mxu0 0.0
    %793 = vmatprep.subr.mxu0 0.0
    %794 = vmatpush1.msra.mxu0 0.0
    %795 = vmatprep.mubr.f32.mxu0 0.0
    %796 = vmatmul.mubr.f32.gmra.mrb[0].mxu0 %v722
    %v797 = vpop.f32.mrb[0].mxu0
    %v798 = vadd.f32 %v714, %v797
    %v799 = vpop.f32.mrb[0].mxu0
    %v800 = vadd.f32 %v718, %v799
    %801 = vdwg.mxu0
    %v802 = vxor.u32 %v798, 2147483648
    %v803 = vxor.u32 %v800, 2147483648
    %v804 = vmul.f32 %v802, 1.442695
    %v805 = vpow.pop %v804
    %v806 = vmul.f32 %v803, 1.442695
    %v807 = vpow.pop %v806
    %v808 = vadd.f32 %v805, 1.0
    %v809 = vadd.f32 %v807, 1.0
    %v810 = vrcp.pop %v808
    %v811 = vmul.f32 1.0, %v810
    %v812 = vrcp.pop %v809
    %v813 = vmul.f32 1.0, %v812
    %v816 = vcombine.low %v811, %v813
    %v818 = vunpack.c.l.s4 1966171168
    %v819 = vunpack.c.0.s8 %v818
    %v820 = vlaneseq
    %v821 = vshrl.u32 %v820, 7
    %v822 = vsub.s32 %v819, %v821
    %v823 = vrot.slane %v816, %v822
    %v825 = vunpack.c.l.s4 1966171168
    %v826 = vunpack.c.0.s8 %v825
    %v827 = vlaneseq
    %v828 = vshrl.u32 %v827, 7
    %v829 = vsub.s32 %v826, %v828
    %v830 = vrot.slane %v823, %v829
    %v832 = vlaneseq
    %vm833 = vcmp.ge.s32.totalorder %v832, 0
    %vm834 = vcmp.lt.s32.totalorder %v832, 256
    %vm835 = vmand %vm833, %vm834
    %836 = vst.msk [vmem:[#allocation4] sm:$0x3] %vm835, %v830
    // Predicated region
    $region26: #{tpu_custom_call.1} parent=1 // pred_check
      _
    $region27: #{tpu_custom_call.1} parent=1 // pred_check_branch
      %838 = sbr.rel (0) target = $region29
    $region28: #{tpu_custom_call.1} parent=1 // pred_region
      %s840 = ssub.s32 2048, 2048
      %841 = vsyncadd [#allocation3], %s840
      %s842 = sshll.u32 [#allocation2], 4
      %s843 = int_to_ptr.vmem [resolvable:$true] %s842
      %848 = dma.vmem_to_hbm [thread:$0]  %s843, 2048, %s6, [#allocation3], 64, 64, 4
    $region29: #{tpu_custom_call.1} parent=1 // pred_fallthru
      _
    // Predicated region
    $region30: #{tpu_custom_call.1} parent=1 // pred_check
      _
    $region31: #{tpu_custom_call.1} parent=1 // pred_check_branch
      %850 = sbr.rel (0) target = $region33
    $region32: #{tpu_custom_call.1} parent=1 // pred_region
      %s852 = ssub.s32 32, 32
      %853 = vsyncadd [#allocation5], %s852
      %s855 = sshll.u32 [#allocation4], 4
      %s856 = int_to_ptr.vmem [resolvable:$true] %s855
      %858 = dma.vmem_to_hbm [thread:$0]  %s856, 32, %s7, [#allocation5]
    $region33: #{tpu_custom_call.1} parent=1 // pred_fallthru
      _
    // Predicated region
    $region34: #{tpu_custom_call.1} parent=1 // pred_check
      _
    $region35: #{tpu_custom_call.1} parent=1 // pred_check_branch
      %860 = sbr.rel (0) target = $region37
    $region36: #{tpu_custom_call.1} parent=1 // pred_region
      %861 = dma.done [#allocation3], 2048
    $region37: #{tpu_custom_call.1} parent=1 // pred_fallthru
      _
    // Predicated region
    $region38: #{tpu_custom_call.1} parent=1 // pred_check
      _
    $region39: #{tpu_custom_call.1} parent=1 // pred_check_branch
      %863 = sbr.rel (0) target = $region41
    $region40: #{tpu_custom_call.1} parent=1 // pred_region
      %864 = dma.done [#allocation5], 32
    $region41: #{tpu_custom_call.1} parent=1 // pred_fallthru
      _
    %865 = vsyncpa [#allocation3], 1
    %866 = vsyncpa [#allocation5], 1

</llo_original>
